<compile_context>
chip_gen: v6e
topology: v6e:2x2x1
jax: 0.10.0
libtpu: 0.0.40
codegen_flags: <defaults>
</compile_context>

<pallas_src>
import jax
import jax.numpy as jnp
from jax.experimental import pallas as pl
from jax.experimental.pallas import tpu as pltpu


def _add_kernel(a_ref, b_ref, o_ref):
    # Whole-tile elementwise add on the VPU.
    o_ref[...] = a_ref[...] + b_ref[...]


def _choose_2d_view(shape, total):
    """Pick a (rows, lanes) view of the flattened tensor with NO padding.

    Prefers lane-dense widths (multiple of 128 -> unmasked full-vreg vst);
    otherwise merges trailing dims so the last axis is as wide as possible
    (<= 1024) while still dividing the element count exactly.
    """
    for w in (1024, 512, 256, 128):
        if total % w == 0:
            return total // w, w
    if len(shape) >= 2:
        w = shape[-1]
        for d in reversed(shape[:-1]):
            if w * d > 1024:
                break
            w *= d
        return total // w, w          # w is a product of trailing dims -> exact
    return 1, total


_SMALL_BYTES = 1 << 20          # <= 1 MiB per array: whole-array VMEM, no grid
_TARGET_BLOCK_BYTES = 2 << 20   # ~2 MiB blocks: 3 arrays x 2 bufs = 12 MiB VMEM


@jax.jit
def pallas_add(x234: jax.Array, x220: jax.Array) -> jax.Array:
    assert x234.shape == x220.shape
    assert x234.dtype == x220.dtype

    orig_shape = x234.shape
    total = x234.size
    itemsize = jnp.dtype(x234.dtype).itemsize

    rows, lanes = _choose_2d_view(orig_shape, total)
    a2 = x234.reshape(rows, lanes)   # free: contiguous row-major reshape
    b2 = x220.reshape(rows, lanes)

    if total * itemsize <= _SMALL_BYTES:
        # Small path: single VMEM-resident block, no pipeline machinery.
        out2 = pl.pallas_call(
            _add_kernel,
            out_shape=jax.ShapeDtypeStruct((rows, lanes), x234.dtype),
            in_specs=[pl.BlockSpec(memory_space=pltpu.MemorySpace.VMEM)] * 2,
            out_specs=pl.BlockSpec(memory_space=pltpu.MemorySpace.VMEM),
        )(a2, b2)
    else:
        # Large-tensor template path: row-tiled, double-buffered pipeline.
        rows_per_block = _TARGET_BLOCK_BYTES // (lanes * itemsize)
        rows_per_block = max(8, (rows_per_block // 8) * 8)
        # Cap so the grid has at least 2 steps (v7x: 2 TCs share HBM BW).
        half_rows = max(8, (((rows + 1) // 2 + 7) // 8) * 8)
        rows_per_block = min(rows_per_block, half_rows, rows)
        grid = (pl.cdiv(rows, rows_per_block),)  # ragged last block is masked

        out2 = pl.pallas_call(
            _add_kernel,
            out_shape=jax.ShapeDtypeStruct((rows, lanes), x234.dtype),
            grid=grid,
            in_specs=[
                pl.BlockSpec((rows_per_block, lanes), lambda i: (i, 0)),
                pl.BlockSpec((rows_per_block, lanes), lambda i: (i, 0)),
            ],
            out_specs=pl.BlockSpec((rows_per_block, lanes), lambda i: (i, 0)),
            compiler_params=pltpu.CompilerParams(
                dimension_semantics=("parallel",)
            ),
        )(a2, b2)

    return out2.reshape(orig_shape)


if __name__ == "__main__":
    key = jax.random.PRNGKey(0)
    k1, k2 = jax.random.split(key)

    # Shape implied by the module's forward: [1, 112, 14, 14]
    shape = (1, 112, 14, 14)
    x234 = jax.random.normal(k1, shape, dtype=jnp.float32)
    x220 = jax.random.normal(k2, shape, dtype=jnp.float32)

    out = pallas_add(x234, x220)
    jax.block_until_ready(out)

    # Correctness check against plain JAX reference.
    ref = x234 + x220
    assert out.shape == shape
    assert out.dtype == jnp.float32
    assert jnp.allclose(out, ref, atol=1e-6, rtol=1e-6)

    print("KERNEL_OK")
</pallas_src>

<mosaic_0001>
module attributes {stable_mosaic.version = 11 : i64} {
  func.func @_add_kernel(%arg0: memref<112x196xf32, #tpu.memory_space<vmem>>, %arg1: memref<112x196xf32, #tpu.memory_space<vmem>>, %arg2: memref<112x196xf32, #tpu.memory_space<vmem>>) attributes {dimension_semantics = [], scalar_prefetch = 0 : i64, scratch_operands = 0 : i64, tpu.core_type = #tpu.core_type<tc>} {
    %c0 = arith.constant 0 : index
    %c0_0 = arith.constant 0 : index
    %0 = vector.load %arg0[%c0, %c0_0] : memref<112x196xf32, #tpu.memory_space<vmem>>, vector<112x196xf32>
    %c0_1 = arith.constant 0 : index
    %c0_2 = arith.constant 0 : index
    %1 = vector.load %arg1[%c0_1, %c0_2] : memref<112x196xf32, #tpu.memory_space<vmem>>, vector<112x196xf32>
    %2 = arith.addf %0, %1 : vector<112x196xf32>
    %c0_3 = arith.constant 0 : index
    %c0_4 = arith.constant 0 : index
    %3 = vector.load %arg2[%c0_3, %c0_4] : memref<112x196xf32, #tpu.memory_space<vmem>>, vector<112x196xf32>
    tpu.vector_store %arg2[%c0_3, %c0_4], %2 {strides = array<i32>} : memref<112x196xf32, #tpu.memory_space<vmem>>, vector<112x196xf32>,
    return
  }
}

</mosaic_0001>

<llo_original>
// kernel: pallas_add.1
$region0: #{pallas_add.1}
  #allocation0 [shape = 'u32[]', space=smem, size = 0x4, offset = 0x4, fixed_abs, tag = 'smem constant byte address 0x4 - core index']
  #allocation1 [shape = 'u32[144,128]{1,0:T(1,128)}', space=vmem, size = 0x12000, scoped, tag = 'internal scratch']
  %s0 = inlined_call_operand.vmem [shape: f32[112,196], index: 0, kind: input, shape index: {}]
  %s1 = inlined_call_operand.vmem [shape: f32[112,196], index: 1, kind: input, shape index: {}]
  %s2 = inlined_call_operand.vmem [shape: f32[112,196], index: 2, kind: output, shape index: {}]
  %s3 = sld [smem:[#allocation0]]
  $region18: #{pallas_add.1} parent=0
    _
  %s5 = ssub.s32 1, %s3
  %s6 = scalar_select 0, %s5, %s3
  // Predicated region
  $region2: #{pallas_add.1} parent=0 // pred_check
    _
  $region3: #{pallas_add.1} parent=0 // pred_check_branch
    %8 = sbr.rel (0) target = $region5
  $region4: #{pallas_add.1} parent=0 // pred_region
    _
  $region5: #{pallas_add.1} parent=0 // pred_fallthru
    _
  // Predicated region
  $region6: #{pallas_add.1} parent=0 // pred_check
    _
  $region7: #{pallas_add.1} parent=0 // pred_check_branch
    %10 = sbr.rel (0) target = $region9
  $region8: #{pallas_add.1} parent=0 // pred_region
    _
  $region9: #{pallas_add.1} parent=0 // pred_fallthru
    _
  %v11 = vld [vmem:[%s0] sm:$0xff]
  %v12 = vld [vmem:[%s0 + $0x8] sm:$0xff]
  %v13 = vld [vmem:[%s0 + $0x10] sm:$0xff]
  %v14 = vld [vmem:[%s0 + $0x18] sm:$0xff]
  %v15 = vld [vmem:[%s0 + $0x20] sm:$0xff]
  %v16 = vld [vmem:[%s0 + $0x28] sm:$0xff]
  %v17 = vld [vmem:[%s0 + $0x30] sm:$0xff]
  %v18 = vld [vmem:[%s0 + $0x38] sm:$0xff]
  %v19 = vld [vmem:[%s0 + $0x40] sm:$0xff]
  %v20 = vld [vmem:[%s0 + $0x48] sm:$0xff]
  %v21 = vld [vmem:[%s0 + $0x50] sm:$0xff]
  %v22 = vld [vmem:[%s0 + $0x58] sm:$0xff]
  %v23 = vld [vmem:[%s0 + $0x60] sm:$0xff]
  %v24 = vld [vmem:[%s0 + $0x68] sm:$0xff]
  %v25 = vld [vmem:[%s0 + $0x70] sm:$0xff]
  %v26 = vld [vmem:[%s0 + $0x78] sm:$0xff]
  %v27 = vld [vmem:[%s0 + $0x80] sm:$0xff]
  %v28 = vld [vmem:[%s0 + $0x88] sm:$0xff]
  %v29 = vld [vmem:[%s0 + $0x90] sm:$0xff]
  %v30 = vld [vmem:[%s0 + $0x98] sm:$0xff]
  %v31 = vld [vmem:[%s0 + $0xa0] sm:$0xff]
  %v32 = vld [vmem:[%s0 + $0xa8] sm:$0xff]
  %v33 = vld [vmem:[%s0 + $0xb0] sm:$0xff]
  %v34 = vld [vmem:[%s0 + $0xb8] sm:$0xff]
  %v35 = vld [vmem:[%s0 + $0xc0] sm:$0xff]
  %v36 = vld [vmem:[%s0 + $0xc8] sm:$0xff]
  %v37 = vld [vmem:[%s0 + $0xd0] sm:$0xff]
  %v38 = vld [vmem:[%s0 + $0xd8] sm:$0xff]
  %v39 = vld [vmem:[%s1] sm:$0xff]
  %v40 = vld [vmem:[%s1 + $0x8] sm:$0xff]
  %v41 = vld [vmem:[%s1 + $0x10] sm:$0xff]
  %v42 = vld [vmem:[%s1 + $0x18] sm:$0xff]
  %v43 = vld [vmem:[%s1 + $0x20] sm:$0xff]
  %v44 = vld [vmem:[%s1 + $0x28] sm:$0xff]
  %v45 = vld [vmem:[%s1 + $0x30] sm:$0xff]
  %v46 = vld [vmem:[%s1 + $0x38] sm:$0xff]
  %v47 = vld [vmem:[%s1 + $0x40] sm:$0xff]
  %v48 = vld [vmem:[%s1 + $0x48] sm:$0xff]
  %v49 = vld [vmem:[%s1 + $0x50] sm:$0xff]
  %v50 = vld [vmem:[%s1 + $0x58] sm:$0xff]
  %v51 = vld [vmem:[%s1 + $0x60] sm:$0xff]
  %v52 = vld [vmem:[%s1 + $0x68] sm:$0xff]
  %v53 = vld [vmem:[%s1 + $0x70] sm:$0xff]
  %v54 = vld [vmem:[%s1 + $0x78] sm:$0xff]
  %v55 = vld [vmem:[%s1 + $0x80] sm:$0xff]
  %v56 = vld [vmem:[%s1 + $0x88] sm:$0xff]
  %v57 = vld [vmem:[%s1 + $0x90] sm:$0xff]
  %v58 = vld [vmem:[%s1 + $0x98] sm:$0xff]
  %v59 = vld [vmem:[%s1 + $0xa0] sm:$0xff]
  %v60 = vld [vmem:[%s1 + $0xa8] sm:$0xff]
  %v61 = vld [vmem:[%s1 + $0xb0] sm:$0xff]
  %v62 = vld [vmem:[%s1 + $0xb8] sm:$0xff]
  %v63 = vld [vmem:[%s1 + $0xc0] sm:$0xff]
  %v64 = vld [vmem:[%s1 + $0xc8] sm:$0xff]
  %v65 = vld [vmem:[%s1 + $0xd0] sm:$0xff]
  %v66 = vld [vmem:[%s1 + $0xd8] sm:$0xff]
  %v67 = vadd.f32 %v11, %v39
  %v68 = vadd.f32 %v12, %v40
  %v69 = vadd.f32 %v13, %v41
  %v70 = vadd.f32 %v14, %v42
  %v71 = vadd.f32 %v15, %v43
  %v72 = vadd.f32 %v16, %v44
  %v73 = vadd.f32 %v17, %v45
  %v74 = vadd.f32 %v18, %v46
  %v75 = vadd.f32 %v19, %v47
  %v76 = vadd.f32 %v20, %v48
  %v77 = vadd.f32 %v21, %v49
  %v78 = vadd.f32 %v22, %v50
  %v79 = vadd.f32 %v23, %v51
  %v80 = vadd.f32 %v24, %v52
  %v81 = vadd.f32 %v25, %v53
  %v82 = vadd.f32 %v26, %v54
  %v83 = vadd.f32 %v27, %v55
  %v84 = vadd.f32 %v28, %v56
  %v85 = vadd.f32 %v29, %v57
  %v86 = vadd.f32 %v30, %v58
  %v87 = vadd.f32 %v31, %v59
  %v88 = vadd.f32 %v32, %v60
  %v89 = vadd.f32 %v33, %v61
  %v90 = vadd.f32 %v34, %v62
  %v91 = vadd.f32 %v35, %v63
  %v92 = vadd.f32 %v36, %v64
  %v93 = vadd.f32 %v37, %v65
  %v94 = vadd.f32 %v38, %v66
  %95 = vst [vmem:[%s2] sm:$0xff] %v67
  %vm96 = vcmask 556032
  %97 = vst.msk [vmem:[%s2 + $0x8] sm:$0xff] %vm96, %v68
  %98 = vst [vmem:[%s2 + $0x10] sm:$0xff] %v69
  %99 = vst.msk [vmem:[%s2 + $0x18] sm:$0xff] %vm96, %v70
  %100 = vst [vmem:[%s2 + $0x20] sm:$0xff] %v71
  %101 = vst.msk [vmem:[%s2 + $0x28] sm:$0xff] %vm96, %v72
  %102 = vst [vmem:[%s2 + $0x30] sm:$0xff] %v73
  %103 = vst.msk [vmem:[%s2 + $0x38] sm:$0xff] %vm96, %v74
  %104 = vst [vmem:[%s2 + $0x40] sm:$0xff] %v75
  %105 = vst.msk [vmem:[%s2 + $0x48] sm:$0xff] %vm96, %v76
  %106 = vst [vmem:[%s2 + $0x50] sm:$0xff] %v77
  %107 = vst.msk [vmem:[%s2 + $0x58] sm:$0xff] %vm96, %v78
  %108 = vst [vmem:[%s2 + $0x60] sm:$0xff] %v79
  %109 = vst.msk [vmem:[%s2 + $0x68] sm:$0xff] %vm96, %v80
  %110 = vst [vmem:[%s2 + $0x70] sm:$0xff] %v81
  %111 = vst.msk [vmem:[%s2 + $0x78] sm:$0xff] %vm96, %v82
  %112 = vst [vmem:[%s2 + $0x80] sm:$0xff] %v83
  %113 = vst.msk [vmem:[%s2 + $0x88] sm:$0xff] %vm96, %v84
  %114 = vst [vmem:[%s2 + $0x90] sm:$0xff] %v85
  %115 = vst.msk [vmem:[%s2 + $0x98] sm:$0xff] %vm96, %v86
  %116 = vst [vmem:[%s2 + $0xa0] sm:$0xff] %v87
  %117 = vst.msk [vmem:[%s2 + $0xa8] sm:$0xff] %vm96, %v88
  %118 = vst [vmem:[%s2 + $0xb0] sm:$0xff] %v89
  %119 = vst.msk [vmem:[%s2 + $0xb8] sm:$0xff] %vm96, %v90
  %120 = vst [vmem:[%s2 + $0xc0] sm:$0xff] %v91
  %121 = vst.msk [vmem:[%s2 + $0xc8] sm:$0xff] %vm96, %v92
  %122 = vst [vmem:[%s2 + $0xd0] sm:$0xff] %v93
  %123 = vst.msk [vmem:[%s2 + $0xd8] sm:$0xff] %vm96, %v94
  // Predicated region
  $region10: #{pallas_add.1} parent=0 // pred_check
    _
  $region11: #{pallas_add.1} parent=0 // pred_check_branch
    %125 = sbr.rel (0) target = $region13
  $region12: #{pallas_add.1} parent=0 // pred_region
    _
  $region13: #{pallas_add.1} parent=0 // pred_fallthru
    _
  // Predicated region
  $region14: #{pallas_add.1} parent=0 // pred_check
    _
  $region15: #{pallas_add.1} parent=0 // pred_check_branch
    %127 = sbr.rel (0) target = $region17
  $region16: #{pallas_add.1} parent=0 // pred_region
    _
  $region17: #{pallas_add.1} parent=0 // pred_fallthru
    _

</llo_original>
